<compile_context>
chip_gen: v6e
topology: v6e:2x2x1
jax: 0.10.0
libtpu: 0.0.40
codegen_flags: <defaults>
</compile_context>

<pallas_src>
import jax
import jax.numpy as jnp
from jax.experimental import pallas as pl
from jax.experimental.pallas import tpu as pltpu


def cond_conv_kernel(x_ref, w1_ref, b1_ref, w2a_ref, b2a_ref, w2g_ref, b2g_ref,
                     o_ref):
    # x_ref:   (1, TL)     (batch dim squeezed by BlockSpec)
    # w1_ref:  (2C, 1), b1_ref: (2C, 1)
    # w2a_ref: (2C, 2C), b2a_ref: (2C, 1)   -> GLU "value" half
    # w2g_ref: (2C, 2C), b2g_ref: (2C, 1)   -> GLU "gate" half
    # o_ref:   (2C, TL)
    x = x_ref[...]

    # input_projection (1x1 conv, in_channels=1) + ReLU: rank-1 -> VPU broadcast
    # multiply, keep the accumulation in f32.
    h = (w1_ref[...].astype(jnp.float32) * x.astype(jnp.float32)
         + b1_ref[...].astype(jnp.float32))                       # (2C, TL)
    h = jnp.maximum(h, 0.0)

    # output_projection split into the two GLU halves; MXU matmuls in the
    # native weight dtype with f32 accumulation.
    h_mx = h.astype(w2a_ref.dtype)
    a = (jnp.dot(w2a_ref[...], h_mx, preferred_element_type=jnp.float32)
         + b2a_ref[...].astype(jnp.float32))                      # (2C, TL)
    g = (jnp.dot(w2g_ref[...], h_mx, preferred_element_type=jnp.float32)
         + b2g_ref[...].astype(jnp.float32))                      # (2C, TL)

    # GLU: value * sigmoid(gate)   (sigmoid goes to the EUP slot)
    o_ref[...] = (a * jax.nn.sigmoid(g)).astype(o_ref.dtype)


def _pick_l_tile(L):
    """Largest lane-dense (multiple of 128) divisor of L, capped at 2048."""
    if L % 128 != 0:
        return L  # fall back to full-L blocks (still correct, maybe masked)
    for cand in (2048, 1024, 512, 256, 128):
        if L % cand == 0:
            return cand
    return L


def condition_conv_block(x, w1, b1, w2, b2):
    """x: (B, 1, L); w1: (2C, 1); b1: (2C,); w2: (4C, 2C); b2: (4C,)."""
    B, _, L = x.shape
    two_c = w1.shape[0]

    # Split the output projection into the GLU "value" and "gate" halves
    # wrapper-side (avoids the in-kernel sublane slice of a (4C, L) tensor).
    w2_a, w2_g = w2[:two_c, :], w2[two_c:, :]
    b2_a = b2[:two_c].reshape(two_c, 1)
    b2_g = b2[two_c:].reshape(two_c, 1)
    b1_col = b1.reshape(two_c, 1)

    tl = _pick_l_tile(L)
    n_l = L // tl

    return pl.pallas_call(
        cond_conv_kernel,
        out_shape=jax.ShapeDtypeStruct((B, two_c, L), x.dtype),
        grid_spec=pltpu.PrefetchScalarGridSpec(
            num_scalar_prefetch=0,
            grid=(B, n_l),
            in_specs=[
                pl.BlockSpec((None, 1, tl), lambda b, lt: (b, 0, lt)),   # x
                pl.BlockSpec((two_c, 1), lambda b, lt: (0, 0)),          # w1
                pl.BlockSpec((two_c, 1), lambda b, lt: (0, 0)),          # b1
                pl.BlockSpec((two_c, two_c), lambda b, lt: (0, 0)),      # w2_a
                pl.BlockSpec((two_c, 1), lambda b, lt: (0, 0)),          # b2_a
                pl.BlockSpec((two_c, two_c), lambda b, lt: (0, 0)),      # w2_g
                pl.BlockSpec((two_c, 1), lambda b, lt: (0, 0)),          # b2_g
            ],
            out_specs=pl.BlockSpec((None, two_c, tl), lambda b, lt: (b, 0, lt)),
        ),
        compiler_params=pltpu.CompilerParams(
            # Both axes independent -> shardable across v7x's 2 TensorCores.
            dimension_semantics=("parallel", "parallel"),
        ),
    )(x, w1, b1_col, w2_a, b2_a, w2_g, b2_g)


def reference(x, w1, b1, w2, b2):
    # Pure-JAX reference mirroring the PyTorch forward (un-split weights).
    h = jax.nn.relu(jnp.einsum("oi,bil->bol", w1, x) + b1[None, :, None])
    y = jnp.einsum("oi,bil->bol", w2, h) + b2[None, :, None]
    two_c = w1.shape[0]
    return y[:, :two_c, :] * jax.nn.sigmoid(y[:, two_c:, :])


if __name__ == "__main__":
    residual_channels = 4
    B, L = 2, 256
    two_c = 2 * residual_channels
    four_c = 4 * residual_channels

    key = jax.random.PRNGKey(0)
    kx, kw1, kb1, kw2, kb2 = jax.random.split(key, 5)

    x = jax.random.normal(kx, (B, 1, L), dtype=jnp.float32)

    # Kaiming-normal-ish deterministic init (fan_in based std), biases uniform-like.
    w1 = jax.random.normal(kw1, (two_c, 1), dtype=jnp.float32) * (2.0 ** 0.5)   # fan_in = 1
    b1 = jax.random.uniform(kb1, (two_c,), dtype=jnp.float32, minval=-1.0, maxval=1.0)
    w2 = jax.random.normal(kw2, (four_c, two_c), dtype=jnp.float32) * ((2.0 / two_c) ** 0.5)
    b2 = jax.random.uniform(
        kb2, (four_c,), dtype=jnp.float32,
        minval=-(1.0 / two_c) ** 0.5, maxval=(1.0 / two_c) ** 0.5)

    out = condition_conv_block(x, w1, b1, w2, b2)
    out = jax.block_until_ready(out)

    ref = reference(x, w1, b1, w2, b2)
    assert out.shape == (B, two_c, L), out.shape
    assert jnp.allclose(out, ref, atol=1e-5, rtol=1e-5), "mismatch vs reference"

    print("KERNEL_OK")
</pallas_src>

<mosaic_0001>
module attributes {stable_mosaic.version = 11 : i64} {
  func.func @cond_conv_kernel(%arg0: i32, %arg1: i32, %arg2: memref<1x1x256xf32, #tpu.memory_space<vmem>>, %arg3: memref<8x1xf32, #tpu.memory_space<vmem>>, %arg4: memref<8x1xf32, #tpu.memory_space<vmem>>, %arg5: memref<8x8xf32, #tpu.memory_space<vmem>>, %arg6: memref<8x1xf32, #tpu.memory_space<vmem>>, %arg7: memref<8x8xf32, #tpu.memory_space<vmem>>, %arg8: memref<8x1xf32, #tpu.memory_space<vmem>>, %arg9: memref<1x8x256xf32, #tpu.memory_space<vmem>>) attributes {dimension_semantics = [#tpu.dimension_semantics<parallel>, #tpu.dimension_semantics<parallel>], iteration_bounds = array<i64: 2, 1>, scalar_prefetch = 0 : i64, scratch_operands = 0 : i64, tpu.core_type = #tpu.core_type<tc>, window_params = [{transform_indices = @transform_0, window_bounds = array<i64: 1, 1, 256>}, {pipeline_mode = #tpu.pipeline_mode<synchronous>, transform_indices = @transform_1, window_bounds = array<i64: 8, 1>}, {pipeline_mode = #tpu.pipeline_mode<synchronous>, transform_indices = @transform_2, window_bounds = array<i64: 8, 1>}, {pipeline_mode = #tpu.pipeline_mode<synchronous>, transform_indices = @transform_3, window_bounds = array<i64: 8, 8>}, {pipeline_mode = #tpu.pipeline_mode<synchronous>, transform_indices = @transform_4, window_bounds = array<i64: 8, 1>}, {pipeline_mode = #tpu.pipeline_mode<synchronous>, transform_indices = @transform_5, window_bounds = array<i64: 8, 8>}, {pipeline_mode = #tpu.pipeline_mode<synchronous>, transform_indices = @transform_6, window_bounds = array<i64: 8, 1>}, {transform_indices = @transform_7, window_bounds = array<i64: 1, 8, 256>}]} {
    %c0 = arith.constant 0 : index
    %c0_0 = arith.constant 0 : index
    %c0_1 = arith.constant 0 : index
    %0 = vector.load %arg2[%c0, %c0_0, %c0_1] : memref<1x1x256xf32, #tpu.memory_space<vmem>>, vector<1x1x256xf32>
    %1 = vector.shape_cast %0 : vector<1x1x256xf32> to vector<1x256xf32>
    %c0_2 = arith.constant 0 : index
    %c0_3 = arith.constant 0 : index
    %2 = vector.load %arg3[%c0_2, %c0_3] : memref<8x1xf32, #tpu.memory_space<vmem>>, vector<8x1xf32>
    %3 = vector.broadcast %2 : vector<8x1xf32> to vector<8x256xf32>
    %4 = vector.broadcast %1 : vector<1x256xf32> to vector<8x256xf32>
    %5 = arith.mulf %3, %4 : vector<8x256xf32>
    %c0_4 = arith.constant 0 : index
    %c0_5 = arith.constant 0 : index
    %6 = vector.load %arg4[%c0_4, %c0_5] : memref<8x1xf32, #tpu.memory_space<vmem>>, vector<8x1xf32>
    %7 = vector.broadcast %6 : vector<8x1xf32> to vector<8x256xf32>
    %8 = arith.addf %5, %7 : vector<8x256xf32>
    %cst = arith.constant 0.000000e+00 : f32
    %9 = vector.broadcast %cst : f32 to vector<8x256xf32>
    %10 = arith.maximumf %8, %9 : vector<8x256xf32>
    %c0_6 = arith.constant 0 : index
    %c0_7 = arith.constant 0 : index
    %11 = vector.load %arg5[%c0_6, %c0_7] : memref<8x8xf32, #tpu.memory_space<vmem>>, vector<8x8xf32>
    %cst_8 = arith.constant dense<0.000000e+00> : vector<8x256xf32>
    %12 = tpu.matmul %11, %10, %cst_8 {dimension_numbers = #tpu.dot_dimension_numbers<[1], [0], [0], [1], [0, 0, 1, 1], [], []>} : vector<8x8xf32>, vector<8x256xf32>, vector<8x256xf32> -> vector<8x256xf32>
    %c0_9 = arith.constant 0 : index
    %c0_10 = arith.constant 0 : index
    %13 = vector.load %arg6[%c0_9, %c0_10] : memref<8x1xf32, #tpu.memory_space<vmem>>, vector<8x1xf32>
    %14 = vector.broadcast %13 : vector<8x1xf32> to vector<8x256xf32>
    %15 = arith.addf %12, %14 : vector<8x256xf32>
    %c0_11 = arith.constant 0 : index
    %c0_12 = arith.constant 0 : index
    %16 = vector.load %arg7[%c0_11, %c0_12] : memref<8x8xf32, #tpu.memory_space<vmem>>, vector<8x8xf32>
    %cst_13 = arith.constant dense<0.000000e+00> : vector<8x256xf32>
    %17 = tpu.matmul %16, %10, %cst_13 {dimension_numbers = #tpu.dot_dimension_numbers<[1], [0], [0], [1], [0, 0, 1, 1], [], []>} : vector<8x8xf32>, vector<8x256xf32>, vector<8x256xf32> -> vector<8x256xf32>
    %c0_14 = arith.constant 0 : index
    %c0_15 = arith.constant 0 : index
    %18 = vector.load %arg8[%c0_14, %c0_15] : memref<8x1xf32, #tpu.memory_space<vmem>>, vector<8x1xf32>
    %19 = vector.broadcast %18 : vector<8x1xf32> to vector<8x256xf32>
    %20 = arith.addf %17, %19 : vector<8x256xf32>
    %21 = arith.negf %20 : vector<8x256xf32>
    %22 = math.exp %21 : vector<8x256xf32>
    %cst_16 = arith.constant 1.000000e+00 : f32
    %23 = vector.broadcast %cst_16 : f32 to vector<8x256xf32>
    %24 = arith.addf %23, %22 : vector<8x256xf32>
    %25 = arith.divf %23, %24 : vector<8x256xf32>
    %26 = arith.mulf %15, %25 : vector<8x256xf32>
    %c0_17 = arith.constant 0 : index
    %c0_18 = arith.constant 0 : index
    %c0_19 = arith.constant 0 : index
    %27 = vector.load %arg9[%c0_17, %c0_18, %c0_19] : memref<1x8x256xf32, #tpu.memory_space<vmem>>, vector<1x8x256xf32>
    %28 = vector.shape_cast %27 : vector<1x8x256xf32> to vector<8x256xf32>
    %29 = vector.shape_cast %26 : vector<8x256xf32> to vector<1x8x256xf32>
    tpu.vector_store %arg9[%c0_17, %c0_18, %c0_19], %29 {strides = array<i32>} : memref<1x8x256xf32, #tpu.memory_space<vmem>>, vector<1x8x256xf32>,
    return
  }
  func.func @transform_0(%arg0: i32, %arg1: i32) -> (i32, i32, i32) {
    %c0_i32 = arith.constant 0 : i32
    %c0_i32_0 = arith.constant 0 : i32
    return %arg0, %c0_i32, %arg1 : i32, i32, i32
  }
  func.func @transform_1(%arg0: i32, %arg1: i32) -> (i32, i32) {
    %c0_i32 = arith.constant 0 : i32
    %c0_i32_0 = arith.constant 0 : i32
    %c0_i32_1 = arith.constant 0 : i32
    return %c0_i32, %c0_i32_0 : i32, i32
  }
  func.func @transform_2(%arg0: i32, %arg1: i32) -> (i32, i32) {
    %c0_i32 = arith.constant 0 : i32
    %c0_i32_0 = arith.constant 0 : i32
    %c0_i32_1 = arith.constant 0 : i32
    return %c0_i32, %c0_i32_0 : i32, i32
  }
  func.func @transform_3(%arg0: i32, %arg1: i32) -> (i32, i32) {
    %c0_i32 = arith.constant 0 : i32
    %c0_i32_0 = arith.constant 0 : i32
    %c0_i32_1 = arith.constant 0 : i32
    return %c0_i32, %c0_i32_0 : i32, i32
  }
  func.func @transform_4(%arg0: i32, %arg1: i32) -> (i32, i32) {
    %c0_i32 = arith.constant 0 : i32
    %c0_i32_0 = arith.constant 0 : i32
    %c0_i32_1 = arith.constant 0 : i32
    return %c0_i32, %c0_i32_0 : i32, i32
  }
  func.func @transform_5(%arg0: i32, %arg1: i32) -> (i32, i32) {
    %c0_i32 = arith.constant 0 : i32
    %c0_i32_0 = arith.constant 0 : i32
    %c0_i32_1 = arith.constant 0 : i32
    return %c0_i32, %c0_i32_0 : i32, i32
  }
  func.func @transform_6(%arg0: i32, %arg1: i32) -> (i32, i32) {
    %c0_i32 = arith.constant 0 : i32
    %c0_i32_0 = arith.constant 0 : i32
    %c0_i32_1 = arith.constant 0 : i32
    return %c0_i32, %c0_i32_0 : i32, i32
  }
  func.func @transform_7(%arg0: i32, %arg1: i32) -> (i32, i32, i32) {
    %c0_i32 = arith.constant 0 : i32
    %c0_i32_0 = arith.constant 0 : i32
    return %arg0, %c0_i32, %arg1 : i32, i32, i32
  }
}

</mosaic_0001>

<llo_original>
// kernel: tpu_custom_call.1
$region0: #{tpu_custom_call.1}
  #allocation0 [shape = 'u32[]', space=smem, size = 0x4, offset = 0x4, fixed_abs, tag = 'smem constant byte address 0x4 - core index']
  #allocation1 [shape = 'u32[144,128]{1,0:T(1,128)}', space=vmem, size = 0x12000, scoped, tag = 'internal scratch']
  %s0 = inlined_call_operand.vmem [shape: f32[2,1,256], index: 0, kind: input, shape index: {}]
  %s1 = inlined_call_operand.vmem [shape: f32[8,1], index: 1, kind: input, shape index: {}]
  %s2 = inlined_call_operand.vmem [shape: f32[8,1], index: 2, kind: input, shape index: {}]
  %s3 = inlined_call_operand.vmem [shape: f32[8,8], index: 3, kind: input, shape index: {}]
  %s4 = inlined_call_operand.vmem [shape: f32[8,1], index: 4, kind: input, shape index: {}]
  %s5 = inlined_call_operand.vmem [shape: f32[8,8], index: 5, kind: input, shape index: {}]
  %s6 = inlined_call_operand.vmem [shape: f32[8,1], index: 6, kind: input, shape index: {}]
  %s7 = inlined_call_operand.hbm [shape: f32[2,8,256], index: 7, kind: output, shape index: {}]
  %s8 = sld [smem:[#allocation0]]
  $region61: #{tpu_custom_call.1} parent=0
    _
  %s10 = ssub.s32 1, %s8
  %s11 = scalar_select 0, %s10, %s8
  $region1: #{tpu_custom_call.1} parent=0
    #allocation2 [shape = 'u8[16384]{0}', space=vmem, size = 0x4000, scoped, tag = 'output window, operand 0']
    #allocation3 [shape = 's32[2]{0}', space=sflag, size = 0x8, scoped, tag = 'scoped memory for tpu_custom_call.1']
    %12 = vsyncpa [#allocation3], 0
    %s13 = scalar_lea.sflag [#allocation3], 1
    %14 = vsyncpa %s13, 0
    loop: start=0, step=1, limit=4
    $region2: #{tpu_custom_call.1} parent=1 // loop_pre_header
      _
    $region3: #{tpu_custom_call.1} parent=1 // loop_header
      %s16 = sphi 0, %s20
      %p17 = scmp.ge.s32.totalorder %s16, 4
      %s23 = sphi 0, %s35
      %s24 = sphi 0, %s31
      %s25 = sphi 0, %s23
      %s26 = sphi 0, %s24
      %s27 = sphi 0, %s25
      %s28 = sphi 0, %s26
      %s40 = sphi 0, %s42
      %s43 = sphi 0, %s40
      %s44 = sphi 0, %s43
      %s60 = sphi 0, %s44
      %s64 = sphi 0, %s64
      %s66 = sphi 0, %s64
      %s67 = sphi 0, %s66
      %s81 = sphi 0, %s67
      %s85 = sphi 0, %s85
      %s87 = sphi 0, %s85
      %s88 = sphi 0, %s87
      %s102 = sphi 0, %s88
      %s106 = sphi 0, %s106
      %s108 = sphi 0, %s106
      %s109 = sphi 0, %s108
      %s123 = sphi 0, %s109
      %s127 = sphi 0, %s127
      %s129 = sphi 0, %s127
      %s130 = sphi 0, %s129
      %s144 = sphi 0, %s130
      %s148 = sphi 0, %s148
      %s150 = sphi 0, %s148
      %s151 = sphi 0, %s150
      %s165 = sphi 0, %s151
      %s169 = sphi 0, %s169
      %s171 = sphi 0, %s169
      %s172 = sphi 0, %s171
      %s186 = sphi 0, %s172
      %s194 = sphi 0, %s196
      %s197 = sphi 0, %s194
      %s198 = sphi 0, %s197
      %s214 = sphi 0, %s198
    $region4: #{tpu_custom_call.1} parent=1 // loop_header_branch
      %19 = sbr.rel (%p17) target = $region8
    $region5: #{tpu_custom_call.1} parent=1 // loop_body
      %s21 = ssub.s32 %s16, 1
      %s22 = ssub.s32 %s16, 2
      %s29 = sadd.s32 1, %s24
      %p30 = scmp.ge.s32.totalorder %s29, 1
      %s31 = scalar_select %p30, 0, %s29
      %s32 = sadd.s32 1, %s23
      %s33 = scalar_select %p30, %s32, %s23
      %p34 = scmp.ge.s32.totalorder %s33, 2
      %s35 = scalar_select %p34, 0, %s33
      %s36 = ssub.s32 %s23, %s35
      %s37 = ssub.s32 %s24, %s31
      %s38 = sor.u32 %s36, %s37
      %p39 = scmp.eq.s32.totalorder %s38, 0
      %s41 = sadd.s32 %s40, 1
      %s42 = scalar_select %p39, %s40, %s41
      %p45 = pneg %p39
      %p46 = scmp.eq.s32.totalorder %s16, 1
      %p47 = por %p45, %p46
      %p48 = scmp.ne.s32.totalorder %s40, %s43
      %p49 = scmp.eq.s32.totalorder %s16, 0
      %p50 = por %p48, %p49
      %p51 = scmp.ne.s32.totalorder %s40, %s43
      %p52 = scmp.eq.s32.totalorder %s21, 1
      %p53 = por %p51, %p52
      %p54 = scmp.ne.s32.totalorder %s43, %s44
      %p55 = scmp.eq.s32.totalorder %s21, 0
      %p56 = por %p54, %p55
      %p57 = scmp.ne.s32.totalorder %s43, %s44
      %p58 = scmp.eq.s32.totalorder %s22, 1
      %p59 = por %p57, %p58
      %p61 = scmp.ne.s32.totalorder %s44, %s60
      %p62 = scmp.eq.s32.totalorder %s22, 0
      %p63 = por %p61, %p62
      %s65 = sadd.s32 %s64, 1
      %p68 = scmp.eq.s32.totalorder %s16, 1
      %p69 = scmp.ne.s32.totalorder %s64, %s66
      %p70 = scmp.eq.s32.totalorder %s16, 0
      %p71 = por %p69, %p70
      %p72 = scmp.ne.s32.totalorder %s64, %s66
      %p73 = scmp.eq.s32.totalorder %s21, 1
      %p74 = por %p72, %p73
      %p75 = scmp.ne.s32.totalorder %s66, %s67
      %p76 = scmp.eq.s32.totalorder %s21, 0
      %p77 = por %p75, %p76
      %p78 = scmp.ne.s32.totalorder %s66, %s67
      %p79 = scmp.eq.s32.totalorder %s22, 1
      %p80 = por %p78, %p79
      %p82 = scmp.ne.s32.totalorder %s67, %s81
      %p83 = scmp.eq.s32.totalorder %s22, 0
      %p84 = por %p82, %p83
      %s86 = sadd.s32 %s85, 1
      %p89 = scmp.eq.s32.totalorder %s16, 1
      %p90 = scmp.ne.s32.totalorder %s85, %s87
      %p91 = scmp.eq.s32.totalorder %s16, 0
      %p92 = por %p90, %p91
      %p93 = scmp.ne.s32.totalorder %s85, %s87
      %p94 = scmp.eq.s32.totalorder %s21, 1
      %p95 = por %p93, %p94
      %p96 = scmp.ne.s32.totalorder %s87, %s88
      %p97 = scmp.eq.s32.totalorder %s21, 0
      %p98 = por %p96, %p97
      %p99 = scmp.ne.s32.totalorder %s87, %s88
      %p100 = scmp.eq.s32.totalorder %s22, 1
      %p101 = por %p99, %p100
      %p103 = scmp.ne.s32.totalorder %s88, %s102
      %p104 = scmp.eq.s32.totalorder %s22, 0
      %p105 = por %p103, %p104
      %s107 = sadd.s32 %s106, 1
      %p110 = scmp.eq.s32.totalorder %s16, 1
      %p111 = scmp.ne.s32.totalorder %s106, %s108
      %p112 = scmp.eq.s32.totalorder %s16, 0
      %p113 = por %p111, %p112
      %p114 = scmp.ne.s32.totalorder %s106, %s108
      %p115 = scmp.eq.s32.totalorder %s21, 1
      %p116 = por %p114, %p115
      %p117 = scmp.ne.s32.totalorder %s108, %s109
      %p118 = scmp.eq.s32.totalorder %s21, 0
      %p119 = por %p117, %p118
      %p120 = scmp.ne.s32.totalorder %s108, %s109
      %p121 = scmp.eq.s32.totalorder %s22, 1
      %p122 = por %p120, %p121
      %p124 = scmp.ne.s32.totalorder %s109, %s123
      %p125 = scmp.eq.s32.totalorder %s22, 0
      %p126 = por %p124, %p125
      %s128 = sadd.s32 %s127, 1
      %p131 = scmp.eq.s32.totalorder %s16, 1
      %p132 = scmp.ne.s32.totalorder %s127, %s129
      %p133 = scmp.eq.s32.totalorder %s16, 0
      %p134 = por %p132, %p133
      %p135 = scmp.ne.s32.totalorder %s127, %s129
      %p136 = scmp.eq.s32.totalorder %s21, 1
      %p137 = por %p135, %p136
      %p138 = scmp.ne.s32.totalorder %s129, %s130
      %p139 = scmp.eq.s32.totalorder %s21, 0
      %p140 = por %p138, %p139
      %p141 = scmp.ne.s32.totalorder %s129, %s130
      %p142 = scmp.eq.s32.totalorder %s22, 1
      %p143 = por %p141, %p142
      %p145 = scmp.ne.s32.totalorder %s130, %s144
      %p146 = scmp.eq.s32.totalorder %s22, 0
      %p147 = por %p145, %p146
      %s149 = sadd.s32 %s148, 1
      %p152 = scmp.eq.s32.totalorder %s16, 1
      %p153 = scmp.ne.s32.totalorder %s148, %s150
      %p154 = scmp.eq.s32.totalorder %s16, 0
      %p155 = por %p153, %p154
      %p156 = scmp.ne.s32.totalorder %s148, %s150
      %p157 = scmp.eq.s32.totalorder %s21, 1
      %p158 = por %p156, %p157
      %p159 = scmp.ne.s32.totalorder %s150, %s151
      %p160 = scmp.eq.s32.totalorder %s21, 0
      %p161 = por %p159, %p160
      %p162 = scmp.ne.s32.totalorder %s150, %s151
      %p163 = scmp.eq.s32.totalorder %s22, 1
      %p164 = por %p162, %p163
      %p166 = scmp.ne.s32.totalorder %s151, %s165
      %p167 = scmp.eq.s32.totalorder %s22, 0
      %p168 = por %p166, %p167
      %s170 = sadd.s32 %s169, 1
      %p173 = scmp.eq.s32.totalorder %s16, 1
      %p174 = scmp.ne.s32.totalorder %s169, %s171
      %p175 = scmp.eq.s32.totalorder %s16, 0
      %p176 = por %p174, %p175
      %p177 = scmp.ne.s32.totalorder %s169, %s171
      %p178 = scmp.eq.s32.totalorder %s21, 1
      %p179 = por %p177, %p178
      %p180 = scmp.ne.s32.totalorder %s171, %s172
      %p181 = scmp.eq.s32.totalorder %s21, 0
      %p182 = por %p180, %p181
      %p183 = scmp.ne.s32.totalorder %s171, %s172
      %p184 = scmp.eq.s32.totalorder %s22, 1
      %p185 = por %p183, %p184
      %p187 = scmp.ne.s32.totalorder %s172, %s186
      %p188 = scmp.eq.s32.totalorder %s22, 0
      %p189 = por %p187, %p188
      %s190 = ssub.s32 %s23, %s35
      %s191 = ssub.s32 %s24, %s31
      %s192 = sor.u32 %s190, %s191
      %p193 = scmp.eq.s32.totalorder %s192, 0
      %s195 = sadd.s32 %s194, 1
      %s196 = scalar_select %p193, %s194, %s195
      %p199 = pneg %p193
      %p200 = scmp.eq.s32.totalorder %s16, 1
      %p201 = por %p199, %p200
      %p202 = scmp.ne.s32.totalorder %s194, %s197
      %p203 = scmp.eq.s32.totalorder %s16, 0
      %p204 = por %p202, %p203
      %p205 = scmp.ne.s32.totalorder %s194, %s197
      %p206 = scmp.eq.s32.totalorder %s21, 1
      %p207 = por %p205, %p206
      %p208 = scmp.ne.s32.totalorder %s197, %s198
      %p209 = scmp.eq.s32.totalorder %s21, 0
      %p210 = por %p208, %p209
      %p211 = scmp.ne.s32.totalorder %s197, %s198
      %p212 = scmp.eq.s32.totalorder %s22, 1
      %p213 = por %p211, %p212
      %p215 = scmp.ne.s32.totalorder %s198, %s214
      %p216 = scmp.eq.s32.totalorder %s22, 0
      %p217 = por %p215, %p216
      %p218 = scmp.le.s32.totalorder 1, %s16
      %p219 = scmp.lt.s32.totalorder %s16, 3
      %p220 = pnand %p218, %p219
      %p221 = pneg %p220
      // Predicated region
      $region9: #{tpu_custom_call.1} parent=5 // pred_check
        _
      $region10: #{tpu_custom_call.1} parent=5 // pred_check_branch
        %223 = sbr.rel (%p220) target = $region12
      $region11: #{tpu_custom_call.1} parent=5 // pred_region
        %s224 = ssub.s32 %s16, 1
        // Predicated region
        $region13: #{tpu_custom_call.1} parent=11 // pred_check
          %p225 = pneg %p77
        $region14: #{tpu_custom_call.1} parent=11 // pred_check_branch
          %227 = sbr.rel (%p225) target = $region16
        $region15: #{tpu_custom_call.1} parent=11 // pred_region
          _
        $region16: #{tpu_custom_call.1} parent=11 // pred_fallthru
          _
        // Predicated region
        $region17: #{tpu_custom_call.1} parent=11 // pred_check
          %p228 = pneg %p98
        $region18: #{tpu_custom_call.1} parent=11 // pred_check_branch
          %230 = sbr.rel (%p228) target = $region20
        $region19: #{tpu_custom_call.1} parent=11 // pred_region
          _
        $region20: #{tpu_custom_call.1} parent=11 // pred_fallthru
          _
        // Predicated region
        $region21: #{tpu_custom_call.1} parent=11 // pred_check
          %p231 = pneg %p119
        $region22: #{tpu_custom_call.1} parent=11 // pred_check_branch
          %233 = sbr.rel (%p231) target = $region24
        $region23: #{tpu_custom_call.1} parent=11 // pred_region
          _
        $region24: #{tpu_custom_call.1} parent=11 // pred_fallthru
          _
        // Predicated region
        $region25: #{tpu_custom_call.1} parent=11 // pred_check
          %p234 = pneg %p140
        $region26: #{tpu_custom_call.1} parent=11 // pred_check_branch
          %236 = sbr.rel (%p234) target = $region28
        $region27: #{tpu_custom_call.1} parent=11 // pred_region
          _
        $region28: #{tpu_custom_call.1} parent=11 // pred_fallthru
          _
        // Predicated region
        $region29: #{tpu_custom_call.1} parent=11 // pred_check
          %p237 = pneg %p161
        $region30: #{tpu_custom_call.1} parent=11 // pred_check_branch
          %239 = sbr.rel (%p237) target = $region32
        $region31: #{tpu_custom_call.1} parent=11 // pred_region
          _
        $region32: #{tpu_custom_call.1} parent=11 // pred_fallthru
          _
        // Predicated region
        $region33: #{tpu_custom_call.1} parent=11 // pred_check
          %p240 = pneg %p182
        $region34: #{tpu_custom_call.1} parent=11 // pred_check_branch
          %242 = sbr.rel (%p240) target = $region36
        $region35: #{tpu_custom_call.1} parent=11 // pred_region
          _
        $region36: #{tpu_custom_call.1} parent=11 // pred_fallthru
          _
      $region12: #{tpu_custom_call.1} parent=5 // pred_fallthru
        _
      %p243 = scmp.lt.s32.totalorder %s16, 2
      // Predicated region
      $region37: #{tpu_custom_call.1} parent=5 // pred_check
        %p244 = pneg %p243
      $region38: #{tpu_custom_call.1} parent=5 // pred_check_branch
        %246 = sbr.rel (%p244) target = $region40
      $region39: #{tpu_custom_call.1} parent=5 // pred_region
        // Predicated region
        $region41: #{tpu_custom_call.1} parent=39 // pred_check
          %p247 = pneg %p50
        $region42: #{tpu_custom_call.1} parent=39 // pred_check_branch
          %249 = sbr.rel (%p247) target = $region44
        $region43: #{tpu_custom_call.1} parent=39 // pred_region
          %s250 = smul.u32 2, %s24
          %p251 = scmp.lt.s32.totalorder %s23, 1
          %s252 = scalar_select %p251, %s23, 1
          %p253 = scmp.lt.s32.totalorder %s250, 1
          %s254 = scalar_select %p253, %s250, 1
          %s255 = smul.addr %s252, 2
          %s256 = sadd.s32 %s254, %s255
          %s257 = scalar_lea.vmem %s0, %s256
          %s258 = smul.u32 2, %s24
        $region44: #{tpu_custom_call.1} parent=39 // pred_fallthru
          _
      $region40: #{tpu_custom_call.1} parent=5 // pred_fallthru
        _
      %p259 = scmp.le.s32.totalorder 1, %s16
      %p260 = scmp.lt.s32.totalorder %s16, 3
      %p261 = pnand %p259, %p260
      %p262 = pneg %p261
      // Predicated region
      $region45: #{tpu_custom_call.1} parent=5 // pred_check
        _
      $region46: #{tpu_custom_call.1} parent=5 // pred_check_branch
        %264 = sbr.rel (%p261) target = $region48
      $region47: #{tpu_custom_call.1} parent=5 // pred_region
        %s265 = ssub.s32 %s16, 1
        %s266 = smul.u32 2, %s26
        %p267 = scmp.lt.s32.totalorder %s25, 1
        %s268 = scalar_select %p267, %s25, 1
        %p269 = scmp.lt.s32.totalorder %s266, 1
        %s270 = scalar_select %p269, %s266, 1
        %s271 = smul.addr %s268, 2
        %s272 = sadd.s32 %s270, %s271
        %s273 = scalar_lea.vmem %s0, %s272
        %p274 = pneg %p56
        %p275 = pneg %p53
        %p276 = pneg %p77
        %p277 = pneg %p74
        %p278 = pneg %p98
        %p279 = pneg %p95
        %p280 = pneg %p119
        %p281 = pneg %p116
        %p282 = pneg %p140
        %p283 = pneg %p137
        %p284 = pneg %p161
        %p285 = pneg %p158
        %p286 = pneg %p182
        %p287 = pneg %p179
        %p288 = pneg %p210
        %p289 = pneg %p207
        %s290 = sand.u32 %s197, 1
        %s291 = scalar_lea.sflag [#allocation3], %s290
        %s292 = sand.u32 %s197, 1
        %s293 = smul.addr %s292, 16
        %s294 = scalar_lea.vmem [#allocation2], %s293
        %s295 = smul.u32 2, %s26
        %p296 = scmp.lt.s32.totalorder %s25, 1
        %s297 = scalar_select %p296, %s25, 1
        %p298 = scmp.lt.s32.totalorder %s295, 1
        %s299 = scalar_select %p298, %s295, 1
        %s300 = smul.addr %s297, 2
        %s301 = sadd.s32 %s299, %s300
        %s302 = scalar_lea.vmem %s0, %s301
        %s303 = smul.u32 2, %s26
        %s304 = smul.u32 2, %s26
        %v305 = vld [vmem:[%s302] sm:$0x3]
        %v306 = vld [vmem:[%s1] sm:$0xff]
        %308 = vset.pattern.permute.xlu0 0
        %309 = vperm.xlu0 %308, %v306
        %v310 = vpop.permute.xlu0 %309
        %v313 = vlaneseq
        %v314 = vshrl.u32 %v313, 7
        %v315 = vsub.s32 0, %v314
        %v316 = vrot.slane %v305, %v315
        %v317 = vlaneseq
        %v318 = vshrl.u32 %v317, 7
        %v319 = vsub.s32 1, %v318
        %v320 = vrot.slane %v305, %v319
        %v323 = vmul.f32 %v310, %v316
        %v324 = vmul.f32 %v310, %v320
        %v325 = vld [vmem:[%s2] sm:$0xff]
        %327 = vset.pattern.permute.xlu0 0
        %328 = vperm.xlu0 %327, %v325
        %v329 = vpop.permute.xlu0 %328
        %v331 = vadd.f32 %v323, %v329
        %v332 = vadd.f32 %v324, %v329
        %v333 = vmax.f32 %v331, 0.0
        %v334 = vmax.f32 %v332, 0.0
        %v335 = vld [vmem:[%s3] sm:$0xff]
        %v336 = vld [vmem:[%s4] sm:$0xff]
        %338 = vset.pattern.permute.xlu0 0
        %339 = vperm.xlu0 %338, %v336
        %v340 = vpop.permute.xlu0 %339
        %vm342 = vcmask 64512
        %v344 = vsel %vm342, %v335, 0
        %346 = vmatprep.subr.mxu0 0.0
        %347 = vmatpush1.msra.mxu0 0.0
        %348 = vmatprep.subr.mxu0 0.0
        %349 = vmatpush1.msra.mxu0 0.0
        %350 = vmatprep.subr.mxu0 0.0
        %351 = vmatpush1.msra.mxu0 0.0
        %352 = vmatprep.subr.mxu0 0.0
        %353 = vmatpush1.msra.mxu0 0.0
        %354 = vmatprep.subr.mxu0 0.0
        %355 = vmatpush1.msra.mxu0 0.0
        %356 = vmatprep.subr.mxu0 0.0
        %357 = vmatpush1.msra.mxu0 0.0
        %358 = vmatprep.subr.mxu0 0.0
        %359 = vmatpush1.msra.mxu0 0.0
        %360 = vmatprep.subr.mxu0 0.0
        %361 = vmatpush1.msra.mxu0 0.0
        %362 = vmatprep.subr.mxu0 0.0
        %363 = vmatpush1.msra.mxu0 0.0
        %364 = vmatprep.subr.mxu0 0.0
        %365 = vmatpush1.msra.mxu0 0.0
        %366 = vmatprep.subr.mxu0 0.0
        %367 = vmatpush1.msra.mxu0 0.0
        %368 = vmatprep.subr.mxu0 0.0
        %369 = vmatpush1.msra.mxu0 0.0
        %370 = vmatprep.subr.mxu0 0.0
        %371 = vmatpush1.msra.mxu0 0.0
        %372 = vmatprep.subr.mxu0 0.0
        %373 = vmatpush1.msra.mxu0 0.0
        %374 = vmatprep.subr.mxu0 0.0
        %375 = vmatpush1.msra.mxu0 0.0
        %376 = vmatprep.subr.mxu0 %v334
        %377 = vmatpush1.msra.mxu0 %v333
        %378 = vmatprep.subr.mxu0 0.0
        %379 = vmatpush2.msra.mxu0 0.0
        %380 = vmatprep.subr.mxu0 0.0
        %381 = vmatpush2.msra.mxu0 0.0
        %382 = vmatprep.subr.mxu0 0.0
        %383 = vmatpush2.msra.mxu0 0.0
        %384 = vmatprep.subr.mxu0 0.0
        %385 = vmatpush2.msra.mxu0 0.0
        %386 = vmatprep.subr.mxu0 0.0
        %387 = vmatpush2.msra.mxu0 0.0
        %388 = vmatprep.subr.mxu0 0.0
        %389 = vmatpush2.msra.mxu0 0.0
        %390 = vmatprep.subr.mxu0 0.0
        %391 = vmatpush2.msra.mxu0 0.0
        %392 = vmatprep.subr.mxu0 0.0
        %393 = vmatpush2.msra.mxu0 0.0
        %394 = vmatprep.subr.mxu0 0.0
        %395 = vmatpush2.msra.mxu0 0.0
        %396 = vmatprep.subr.mxu0 0.0
        %397 = vmatpush2.msra.mxu0 0.0
        %398 = vmatprep.subr.mxu0 0.0
        %399 = vmatpush2.msra.mxu0 0.0
        %400 = vmatprep.subr.mxu0 0.0
        %401 = vmatpush2.msra.mxu0 0.0
        %402 = vmatprep.subr.mxu0 0.0
        %403 = vmatpush2.msra.mxu0 0.0
        %404 = vmatprep.subr.mxu0 0.0
        %405 = vmatpush2.msra.mxu0 0.0
        %406 = vmatprep.subr.mxu0 0.0
        %407 = vmatpush2.msra.mxu0 0.0
        %408 = vmatprep.subr.mxu0 0.0
        %409 = vmatpush2.msra.mxu0 0.0
        %410 = vmatprep.mubr.f32.mxu0 0.0
        %411 = vmatmul.mubr.f32.gmra.mxu0 %v344
        %v412 = vpop.f32.mrf.mxu0
        %v413 = vadd.f32 %v340, %v412
        %v414 = vpop.f32.mrf.mxu0
        %v415 = vadd.f32 %v340, %v414
        %416 = vdwg.mxu0
        %v417 = vld [vmem:[%s5] sm:$0xff]
        %v418 = vld [vmem:[%s6] sm:$0xff]
        %420 = vset.pattern.permute.xlu0 0
        %421 = vperm.xlu0 %420, %v418
        %v422 = vpop.permute.xlu0 %421
        %v425 = vsel %vm342, %v417, 0
        %427 = vmatprep.subr.mxu0 0.0
        %428 = vmatpush1.msra.mxu0 0.0
        %429 = vmatprep.subr.mxu0 0.0
        %430 = vmatpush1.msra.mxu0 0.0
        %431 = vmatprep.subr.mxu0 0.0
        %432 = vmatpush1.msra.mxu0 0.0
        %433 = vmatprep.subr.mxu0 0.0
        %434 = vmatpush1.msra.mxu0 0.0
        %435 = vmatprep.subr.mxu0 0.0
        %436 = vmatpush1.msra.mxu0 0.0
        %437 = vmatprep.subr.mxu0 0.0
        %438 = vmatpush1.msra.mxu0 0.0
        %439 = vmatprep.subr.mxu0 0.0
        %440 = vmatpush1.msra.mxu0 0.0
        %441 = vmatprep.subr.mxu0 0.0
        %442 = vmatpush1.msra.mxu0 0.0
        %443 = vmatprep.subr.mxu0 0.0
        %444 = vmatpush1.msra.mxu0 0.0
        %445 = vmatprep.subr.mxu0 0.0
        %446 = vmatpush1.msra.mxu0 0.0
        %447 = vmatprep.subr.mxu0 0.0
        %448 = vmatpush1.msra.mxu0 0.0
        %449 = vmatprep.subr.mxu0 0.0
        %450 = vmatpush1.msra.mxu0 0.0
        %451 = vmatprep.subr.mxu0 0.0
        %452 = vmatpush1.msra.mxu0 0.0
        %453 = vmatprep.subr.mxu0 0.0
        %454 = vmatpush1.msra.mxu0 0.0
        %455 = vmatprep.subr.mxu0 0.0
        %456 = vmatpush1.msra.mxu0 0.0
        %457 = vmatprep.subr.mxu0 %v334
        %458 = vmatpush1.msra.mxu0 %v333
        %459 = vmatprep.subr.mxu0 0.0
        %460 = vmatpush2.msra.mxu0 0.0
        %461 = vmatprep.subr.mxu0 0.0
        %462 = vmatpush2.msra.mxu0 0.0
        %463 = vmatprep.subr.mxu0 0.0
        %464 = vmatpush2.msra.mxu0 0.0
        %465 = vmatprep.subr.mxu0 0.0
        %466 = vmatpush2.msra.mxu0 0.0
        %467 = vmatprep.subr.mxu0 0.0
        %468 = vmatpush2.msra.mxu0 0.0
        %469 = vmatprep.subr.mxu0 0.0
        %470 = vmatpush2.msra.mxu0 0.0
        %471 = vmatprep.subr.mxu0 0.0
        %472 = vmatpush2.msra.mxu0 0.0
        %473 = vmatprep.subr.mxu0 0.0
        %474 = vmatpush2.msra.mxu0 0.0
        %475 = vmatprep.subr.mxu0 0.0
        %476 = vmatpush2.msra.mxu0 0.0
        %477 = vmatprep.subr.mxu0 0.0
        %478 = vmatpush2.msra.mxu0 0.0
        %479 = vmatprep.subr.mxu0 0.0
        %480 = vmatpush2.msra.mxu0 0.0
        %481 = vmatprep.subr.mxu0 0.0
        %482 = vmatpush2.msra.mxu0 0.0
        %483 = vmatprep.subr.mxu0 0.0
        %484 = vmatpush2.msra.mxu0 0.0
        %485 = vmatprep.subr.mxu0 0.0
        %486 = vmatpush2.msra.mxu0 0.0
        %487 = vmatprep.subr.mxu0 0.0
        %488 = vmatpush2.msra.mxu0 0.0
        %489 = vmatprep.subr.mxu0 0.0
        %490 = vmatpush2.msra.mxu0 0.0
        %491 = vmatprep.mubr.f32.mxu0 0.0
        %492 = vmatmul.mubr.f32.gmra.mxu0 %v425
        %v493 = vpop.f32.mrf.mxu0
        %v494 = vadd.f32 %v422, %v493
        %v495 = vpop.f32.mrf.mxu0
        %v496 = vadd.f32 %v422, %v495
        %497 = vdwg.mxu0
        %v498 = vxor.u32 %v494, 2147483648
        %v499 = vxor.u32 %v496, 2147483648
        %v500 = vmul.f32 %v498, 1.442695
        %v501 = vpow.pop %v500
        %v502 = vmul.f32 %v499, 1.442695
        %v503 = vpow.pop %v502
        %v504 = vadd.f32 %v501, 1.0
        %v505 = vadd.f32 %v503, 1.0
        %v506 = vrcp.pop %v504
        %v507 = vmul.f32 1.0, %v506
        %v508 = vrcp.pop %v505
        %v509 = vmul.f32 1.0, %v508
        %v510 = vmul.f32 %v413, %v507
        %v511 = vmul.f32 %v415, %v509
        %512 = vst [vmem:[%s294] sm:$0xff] %v510
        %513 = vst [vmem:[%s294 + $0x8] sm:$0xff] %v511
        %s514 = sand.u32 %s197, 1
        %s515 = scalar_lea.sflag [#allocation3], %s514
        %s516 = sand.u32 %s197, 1
        %s517 = smul.addr %s516, 16
        %s518 = scalar_lea.vmem [#allocation2], %s517
        // Predicated region
        $region49: #{tpu_custom_call.1} parent=47 // pred_check
          %p519 = pneg %p207
        $region50: #{tpu_custom_call.1} parent=47 // pred_check_branch
          %521 = sbr.rel (%p519) target = $region52
        $region51: #{tpu_custom_call.1} parent=47 // pred_region
          %s522 = smul.u32 2, %s26
          %s524 = ssub.s32 256, 256
          %525 = vsyncadd %s515, %s524
          %s526 = smul.addr %s25, 2
          %s527 = sadd.s32 %s522, %s526
          %s528 = smul.addr %s527, 128
          %s529 = scalar_lea.hbm %s7, %s528
          %s531 = sshll.u32 %s518, 4
          %s532 = int_to_ptr.vmem [resolvable:$true] %s531
          %534 = dma.vmem_to_hbm [thread:$0]  %s532, 256, %s529, %s515
        $region52: #{tpu_custom_call.1} parent=47 // pred_fallthru
          _
      $region48: #{tpu_custom_call.1} parent=5 // pred_fallthru
        _
      %p535 = scmp.le.s32.totalorder 2, %s16
      // Predicated region
      $region53: #{tpu_custom_call.1} parent=5 // pred_check
        %p536 = pneg %p535
      $region54: #{tpu_custom_call.1} parent=5 // pred_check_branch
        %538 = sbr.rel (%p536) target = $region56
      $region55: #{tpu_custom_call.1} parent=5 // pred_region
        %s539 = ssub.s32 %s16, 2
        // Predicated region
        $region57: #{tpu_custom_call.1} parent=55 // pred_check
          %p540 = pneg %p213
        $region58: #{tpu_custom_call.1} parent=55 // pred_check_branch
          %542 = sbr.rel (%p540) target = $region60
        $region59: #{tpu_custom_call.1} parent=55 // pred_region
          %s543 = sand.u32 %s198, 1
          %s544 = scalar_lea.sflag [#allocation3], %s543
          %s545 = sand.u32 %s198, 1
          %s546 = smul.addr %s545, 16
          %s547 = scalar_lea.vmem [#allocation2], %s546
          %548 = dma.done %s544, 256
        $region60: #{tpu_custom_call.1} parent=55 // pred_fallthru
          _
      $region56: #{tpu_custom_call.1} parent=5 // pred_fallthru
        _
    $region6: #{tpu_custom_call.1} parent=1 // loop_footer
      %s20 = sadd.s32 1, %s16
    $region7: #{tpu_custom_call.1} parent=1 // loop_footer_branch
      %15 = sbr.rel target = $region3
    $region8: #{tpu_custom_call.1} parent=1 // loop_exit
      _
    %549 = vsyncpa [#allocation3], 1
    %s550 = scalar_lea.sflag [#allocation3], 1
    %551 = vsyncpa %s550, 1

</llo_original>
